<compile_context>
chip_gen: v5e
topology: v5e:2x2
jax: 0.10.0
libtpu: 0.0.40
codegen_flags: <defaults>
</compile_context>

<pallas_src>
import jax
import jax.numpy as jnp
from jax.experimental import pallas as pl
from jax.experimental.pallas import tpu as pltpu


# ---------------------------------------------------------------------------
# Block-size / VMEM budgeting
# ---------------------------------------------------------------------------
def _vmem_budget():
    """(vmem_limit_bytes, per-step in+out byte budget), generation aware."""
    try:
        cap = pltpu.get_tpu_info().vmem_capacity_bytes
    except Exception:
        cap = 64 << 20                      # conservative default (v7x-sized)
    # v5e/v6e (128 MiB physical) -> 64 MiB scoped limit; v7x (64 MiB) -> 32 MiB.
    vmem_limit = min(max(cap // 2, 32 << 20), 96 << 20)
    # Double-buffered footprint ~= 2 * per-step bytes; keep it ~80% of limit.
    step_budget = (vmem_limit * 2) // 5
    return vmem_limit, step_budget


def _choose_tile(leading, bytes_per_row, step_budget, itemsize):
    """Rows (planes or image rows) per grid step."""
    sub = max(8, 32 // max(itemsize, 1))          # sublane granularity per dtype
    tile = max(1, step_budget // max(bytes_per_row, 1))
    if tile >= leading:
        total = leading * bytes_per_row
        if leading >= 2 * sub and total > (8 << 20):
            # Large single-block problem: split into >=2 steps so v7x megacore
            # can shard the 'parallel' axis across both TensorCores.
            half = -(-leading // 2)
            return min(leading, -(-half // sub) * sub)
        return leading
    return min(leading, max(sub, (tile // sub) * sub))


# ---------------------------------------------------------------------------
# Kernels: build the padded block in-register, one aligned full-block store.
# ---------------------------------------------------------------------------
def _make_pad_last_axis_kernel(pad, dtype):
    """Each output row = [pad zeros | input row | pad zeros]."""
    def kernel(x_ref, o_ref):
        t = x_ref.shape[0]
        z = jnp.zeros((t, pad), dtype)
        o_ref[...] = jnp.concatenate([z, x_ref[...], z], axis=-1)
    return kernel


def _make_pad_flat_planes_kernel(H, W, hp, dtype):
    """Flat-plane build for small W_out: output flat row of length H*(W+2*hp)
    assembled from 2H+1 lane-concat pieces (lane-dense store)."""
    def kernel(x_ref, o_ref):
        t = x_ref.shape[0]
        z_edge = jnp.zeros((t, hp), dtype)
        z_mid = jnp.zeros((t, 2 * hp), dtype)
        pieces = [z_edge]
        for r in range(H):                       # static Python loop, H < 128
            pieces.append(x_ref[:, r * W:(r + 1) * W])
            pieces.append(z_mid if r + 1 < H else z_edge)
        o_ref[...] = jnp.concatenate(pieces, axis=-1)
    return kernel


# ---------------------------------------------------------------------------
# Shared pallas_call wrapper for a 2-D (rows, cols) -> (rows, out_cols) pad.
# ---------------------------------------------------------------------------
def _run_pad2d(x2d, out_cols, kernel):
    rows, cols = x2d.shape
    itemsize = jnp.dtype(x2d.dtype).itemsize
    vmem_limit, step_budget = _vmem_budget()
    tile = _choose_tile(rows, (cols + out_cols) * itemsize, step_budget, itemsize)
    grid = (pl.cdiv(rows, tile),)
    cost = pl.CostEstimate(flops=0, transcendentals=0,
                           bytes_accessed=rows * (cols + out_cols) * itemsize)
    return pl.pallas_call(
        kernel,
        out_shape=jax.ShapeDtypeStruct((rows, out_cols), x2d.dtype),
        grid=grid,
        in_specs=[pl.BlockSpec((tile, cols), lambda i: (i, 0))],
        out_specs=pl.BlockSpec((tile, out_cols), lambda i: (i, 0)),
        compiler_params=pltpu.CompilerParams(
            dimension_semantics=("parallel",),
            vmem_limit_bytes=vmem_limit),
        cost_estimate=cost,
    )(x2d)


# ---------------------------------------------------------------------------
# Public wrapper
# ---------------------------------------------------------------------------
def square_pad(x):
    """x: [N, C, H, W] -> zero-padded square-ish [N, C, H+2*vp, W+2*hp]."""
    N, C, H, W = x.shape
    w, h = W, H                              # image.size == (w, h)
    max_wh = max(w, h)
    hp = int((max_wh - w) / 2)
    vp = int((max_wh - h) / 2)

    # Fast path: already square -> identity (skip a full HBM read+write).
    if hp == 0 and vp == 0:
        return x

    H_out, W_out = H + 2 * vp, W + 2 * hp
    dt = x.dtype

    if hp > 0:                               # tall image: pad width, vp == 0
        if W_out >= 128:
            # Rows are already lane-dense; row-granular intra-sample tiling.
            x2 = x.reshape(N * C * H, W)
            out = _run_pad2d(x2, W_out, _make_pad_last_axis_kernel(hp, dt))
        else:
            # Small W_out (e.g. 16/128 lanes): present the output as flat
            # planes so the store is lane-dense; build padded plane in-register.
            xf = x.reshape(N * C, H * W)
            out = _run_pad2d(xf, H * W_out,
                             _make_pad_flat_planes_kernel(H, W, hp, dt))
        return out.reshape(N, C, H, W_out)

    # vp > 0: wide image, pad height (hp == 0).  Flat plane row-major order is
    # [vp*W zeros | H*W interior | vp*W zeros] -> same lane-dense pad kernel.
    # TODO(synk): intra-plane tiling when a single (H_out*W) plane exceeds the
    # per-step VMEM budget (needs misaligned interior windows); plane-granular
    # blocks only for now.
    xf = x.reshape(N * C, H * W)
    out = _run_pad2d(xf, H_out * W, _make_pad_last_axis_kernel(vp * W, dt))
    return out.reshape(N, C, H_out, W)


# ---------------------------------------------------------------------------
# Self-test
# ---------------------------------------------------------------------------
if __name__ == "__main__":
    key = jax.random.PRNGKey(0)

    def _ref(a):
        _, _, Hh, Ww = a.shape
        m = max(Hh, Ww)
        hp = int((m - Ww) / 2)
        vp = int((m - Hh) / 2)
        return jnp.pad(a, ((0, 0), (0, 0), (vp, vp), (hp, hp)),
                       mode="constant", constant_values=0.0)

    # Primary case: tall image, small W_out -> lane-dense flat-plane path.
    x = jax.random.normal(key, (2, 4, 16, 10), dtype=jnp.float32)
    out = jax.block_until_ready(square_pad(x))
    assert out.shape == (2, 4, 16, 16), out.shape
    assert jnp.allclose(out, _ref(x)), "mismatch (flat-plane path)"

    # Wide image: vp > 0 path.
    xw = jax.random.normal(jax.random.fold_in(key, 1), (1, 2, 8, 16),
                           dtype=jnp.float32)
    outw = jax.block_until_ready(square_pad(xw))
    assert outw.shape == (1, 2, 16, 16), outw.shape
    assert jnp.allclose(outw, _ref(xw)), "mismatch (vp path)"

    # Tall image with wide rows: W_out >= 128 row-tiled path.
    xt = jax.random.normal(jax.random.fold_in(key, 2), (1, 2, 136, 128),
                           dtype=jnp.float32)
    outt = jax.block_until_ready(square_pad(xt))
    assert outt.shape == (1, 2, 136, 136), outt.shape
    assert jnp.allclose(outt, _ref(xt)), "mismatch (wide-row path)"

    # Already-square fast path.
    xs = jax.random.normal(jax.random.fold_in(key, 3), (2, 4, 16, 16),
                           dtype=jnp.float32)
    outs = jax.block_until_ready(square_pad(xs))
    assert jnp.array_equal(outs, xs), "square fast-path mismatch"

    print("KERNEL_OK")
</pallas_src>

<mosaic_0001>
module attributes {stable_mosaic.version = 11 : i64} {
  func.func @kernel(%arg0: i32, %arg1: memref<8x160xf32, #tpu.memory_space<vmem>>, %arg2: memref<8x256xf32, #tpu.memory_space<vmem>>) attributes {dimension_semantics = [#tpu.dimension_semantics<parallel>], iteration_bounds = array<i64: 1>, scalar_prefetch = 0 : i64, scratch_operands = 0 : i64, tpu.core_type = #tpu.core_type<tc>, window_params = [{transform_indices = @transform_0, window_bounds = array<i64: 8, 160>}, {transform_indices = @transform_1, window_bounds = array<i64: 8, 256>}]} {
    %cst = arith.constant 0.000000e+00 : f32
    %0 = vector.broadcast %cst : f32 to vector<8x3xf32>
    %cst_0 = arith.constant 0.000000e+00 : f32
    %1 = vector.broadcast %cst_0 : f32 to vector<8x6xf32>
    %c0 = arith.constant 0 : index
    %c0_1 = arith.constant 0 : index
    %2 = vector.load %arg1[%c0, %c0_1] : memref<8x160xf32, #tpu.memory_space<vmem>>, vector<8x10xf32>
    %c0_2 = arith.constant 0 : index
    %c10 = arith.constant 10 : index
    %3 = vector.load %arg1[%c0_2, %c10] : memref<8x160xf32, #tpu.memory_space<vmem>>, vector<8x10xf32>
    %c0_3 = arith.constant 0 : index
    %c20 = arith.constant 20 : index
    %4 = vector.load %arg1[%c0_3, %c20] : memref<8x160xf32, #tpu.memory_space<vmem>>, vector<8x10xf32>
    %c0_4 = arith.constant 0 : index
    %c30 = arith.constant 30 : index
    %5 = vector.load %arg1[%c0_4, %c30] : memref<8x160xf32, #tpu.memory_space<vmem>>, vector<8x10xf32>
    %c0_5 = arith.constant 0 : index
    %c40 = arith.constant 40 : index
    %6 = vector.load %arg1[%c0_5, %c40] : memref<8x160xf32, #tpu.memory_space<vmem>>, vector<8x10xf32>
    %c0_6 = arith.constant 0 : index
    %c50 = arith.constant 50 : index
    %7 = vector.load %arg1[%c0_6, %c50] : memref<8x160xf32, #tpu.memory_space<vmem>>, vector<8x10xf32>
    %c0_7 = arith.constant 0 : index
    %c60 = arith.constant 60 : index
    %8 = vector.load %arg1[%c0_7, %c60] : memref<8x160xf32, #tpu.memory_space<vmem>>, vector<8x10xf32>
    %c0_8 = arith.constant 0 : index
    %c70 = arith.constant 70 : index
    %9 = vector.load %arg1[%c0_8, %c70] : memref<8x160xf32, #tpu.memory_space<vmem>>, vector<8x10xf32>
    %c0_9 = arith.constant 0 : index
    %c80 = arith.constant 80 : index
    %10 = vector.load %arg1[%c0_9, %c80] : memref<8x160xf32, #tpu.memory_space<vmem>>, vector<8x10xf32>
    %c0_10 = arith.constant 0 : index
    %c90 = arith.constant 90 : index
    %11 = vector.load %arg1[%c0_10, %c90] : memref<8x160xf32, #tpu.memory_space<vmem>>, vector<8x10xf32>
    %c0_11 = arith.constant 0 : index
    %c100 = arith.constant 100 : index
    %12 = vector.load %arg1[%c0_11, %c100] : memref<8x160xf32, #tpu.memory_space<vmem>>, vector<8x10xf32>
    %c0_12 = arith.constant 0 : index
    %c110 = arith.constant 110 : index
    %13 = vector.load %arg1[%c0_12, %c110] : memref<8x160xf32, #tpu.memory_space<vmem>>, vector<8x10xf32>
    %c0_13 = arith.constant 0 : index
    %c120 = arith.constant 120 : index
    %14 = vector.load %arg1[%c0_13, %c120] : memref<8x160xf32, #tpu.memory_space<vmem>>, vector<8x10xf32>
    %c0_14 = arith.constant 0 : index
    %c130 = arith.constant 130 : index
    %15 = vector.load %arg1[%c0_14, %c130] : memref<8x160xf32, #tpu.memory_space<vmem>>, vector<8x10xf32>
    %c0_15 = arith.constant 0 : index
    %c140 = arith.constant 140 : index
    %16 = vector.load %arg1[%c0_15, %c140] : memref<8x160xf32, #tpu.memory_space<vmem>>, vector<8x10xf32>
    %c0_16 = arith.constant 0 : index
    %c150 = arith.constant 150 : index
    %17 = vector.load %arg1[%c0_16, %c150] : memref<8x160xf32, #tpu.memory_space<vmem>>, vector<8x10xf32>
    %18 = tpu.concatenate %0, %2, %1, %3, %1, %4, %1, %5, %1, %6, %1, %7, %1, %8, %1, %9 in 1 : vector<8x3xf32>, vector<8x10xf32>, vector<8x6xf32>, vector<8x10xf32>, vector<8x6xf32>, vector<8x10xf32>, vector<8x6xf32>, vector<8x10xf32>, vector<8x6xf32>, vector<8x10xf32>, vector<8x6xf32>, vector<8x10xf32>, vector<8x6xf32>, vector<8x10xf32>, vector<8x6xf32>, vector<8x10xf32> -> vector<8x125xf32>
    %19 = tpu.concatenate %1, %10, %1, %11, %1, %12, %1, %13, %1, %14, %1, %15, %1, %16, %1, %17 in 1 : vector<8x6xf32>, vector<8x10xf32>, vector<8x6xf32>, vector<8x10xf32>, vector<8x6xf32>, vector<8x10xf32>, vector<8x6xf32>, vector<8x10xf32>, vector<8x6xf32>, vector<8x10xf32>, vector<8x6xf32>, vector<8x10xf32>, vector<8x6xf32>, vector<8x10xf32>, vector<8x6xf32>, vector<8x10xf32> -> vector<8x128xf32>
    %20 = tpu.concatenate %18, %19, %0 in 1 : vector<8x125xf32>, vector<8x128xf32>, vector<8x3xf32> -> vector<8x256xf32>
    %c0_17 = arith.constant 0 : index
    %c0_18 = arith.constant 0 : index
    %21 = vector.load %arg2[%c0_17, %c0_18] : memref<8x256xf32, #tpu.memory_space<vmem>>, vector<8x256xf32>
    tpu.vector_store %arg2[%c0_17, %c0_18], %20 {strides = array<i32>} : memref<8x256xf32, #tpu.memory_space<vmem>>, vector<8x256xf32>,
    return
  }
  func.func @transform_0(%arg0: i32) -> (i32, i32) {
    %c0_i32 = arith.constant 0 : i32
    %c0_i32_0 = arith.constant 0 : i32
    return %arg0, %c0_i32 : i32, i32
  }
  func.func @transform_1(%arg0: i32) -> (i32, i32) {
    %c0_i32 = arith.constant 0 : i32
    %c0_i32_0 = arith.constant 0 : i32
    return %arg0, %c0_i32 : i32, i32
  }
}

</mosaic_0001>

<llo_original>
// kernel: tpu_custom_call.1
$region0: #{tpu_custom_call.1}
  #allocation0 [shape = 'u32[]', space=smem, size = 0x4, offset = 0x4, fixed_abs, tag = 'smem constant byte address 0x4 - core index']
  #allocation1 [shape = 'u32[72,128]{1,0:T(1,128)}', space=vmem, size = 0x9000, scoped, tag = 'internal scratch']
  %s0 = inlined_call_operand.hbm [shape: f32[8,160], index: 0, kind: input, shape index: {}]
  %s1 = inlined_call_operand.hbm [shape: f32[8,256], index: 1, kind: output, shape index: {}]
  %s2 = sld [smem:[#allocation0]]
  $region18: #{tpu_custom_call.1} parent=0
    _
  %s4 = ssub.s32 1, %s2
  %s5 = scalar_select 0, %s4, %s2
  $region1: #{tpu_custom_call.1} parent=0
    #allocation2 [shape = 'u8[8192]{0}', space=vmem, size = 0x2000, scoped, tag = 'input window, operand 0, single buffered']
    #allocation3 [shape = 's32[1]{0}', space=sflag, size = 0x4, scoped, tag = 'scoped memory for tpu_custom_call.1']
    #allocation4 [shape = 's32[1]{0}', space=sflag, size = 0x4, scoped, tag = 'scoped memory for tpu_custom_call.1']
    #allocation5 [shape = 'u8[8192]{0}', space=vmem, size = 0x2000, scoped, tag = 'output window, operand 0, single buffered']
    %6 = vsyncpa [#allocation3], 0
    %7 = vsyncpa [#allocation4], 0
    // Predicated region
    $region2: #{tpu_custom_call.1} parent=1 // pred_check
      _
    $region3: #{tpu_custom_call.1} parent=1 // pred_check_branch
      %9 = sbr.rel (0) target = $region5
    $region4: #{tpu_custom_call.1} parent=1 // pred_region
      %11 = vsyncadd [#allocation3], 0
      %s13 = sshll.u32 %s0, 4
      %s14 = int_to_ptr.hbm [resolvable:$true] %s13
      %s15 = sshll.u32 [#allocation2], 4
      %s16 = int_to_ptr.vmem [resolvable:$true] %s15
      %18 = dma.hbm_to_vmem [thread:$0]  %s14, 256, %s16, [#allocation3]
    $region5: #{tpu_custom_call.1} parent=1 // pred_fallthru
      _
    // Predicated region
    $region6: #{tpu_custom_call.1} parent=1 // pred_check
      _
    $region7: #{tpu_custom_call.1} parent=1 // pred_check_branch
      %20 = sbr.rel (0) target = $region9
    $region8: #{tpu_custom_call.1} parent=1 // pred_region
      %22 = dma.done [#allocation3], 256
    $region9: #{tpu_custom_call.1} parent=1 // pred_fallthru
      _
    %v23 = vld [vmem:[#allocation2] sm:$0xff]
    %v24 = vld [vmem:[#allocation2 + $0x8] sm:$0xff]
    %26 = vrot.lane.b32.xlu0 %v23, 3
    %v27 = vpop.permute.xlu0 %26
    %29 = vrot.lane.b32.xlu0 %v23, 9
    %v30 = vpop.permute.xlu0 %29
    %32 = vrot.lane.b32.xlu0 %v23, 15
    %v33 = vpop.permute.xlu0 %32
    %35 = vrot.lane.b32.xlu0 %v23, 21
    %v36 = vpop.permute.xlu0 %35
    %38 = vrot.lane.b32.xlu0 %v23, 27
    %v39 = vpop.permute.xlu0 %38
    %41 = vrot.lane.b32.xlu0 %v23, 33
    %v42 = vpop.permute.xlu0 %41
    %44 = vrot.lane.b32.xlu0 %v23, 39
    %v45 = vpop.permute.xlu0 %44
    %47 = vrot.lane.b32.xlu0 %v23, 45
    %v48 = vpop.permute.xlu0 %47
    %vm50 = vcmask 23552
    %v51 = vsel %vm50, 0.0, %v27
    %vm52 = vcmask 105472
    %v53 = vsel %vm52, %v51, 0.0
    %vm54 = vcmask 154624
    %v55 = vsel %vm54, %v53, %v30
    %vm56 = vcmask 236544
    %v57 = vsel %vm56, %v55, 0.0
    %vm58 = vcmask 285696
    %v59 = vsel %vm58, %v57, %v33
    %vm60 = vcmask 367616
    %v61 = vsel %vm60, %v59, 0.0
    %vm62 = vcmask 416768
    %v63 = vsel %vm62, %v61, %v36
    %vm64 = vcmask 498688
    %v65 = vsel %vm64, %v63, 0.0
    %vm66 = vcmask 547840
    %v67 = vsel %vm66, %v65, %v39
    %vm68 = vcmask 629760
    %v69 = vsel %vm68, %v67, 0.0
    %vm70 = vcmask 678912
    %v71 = vsel %vm70, %v69, %v42
    %vm72 = vcmask 760832
    %v73 = vsel %vm72, %v71, 0.0
    %vm74 = vcmask 809984
    %v75 = vsel %vm74, %v73, %v45
    %vm76 = vcmask 891904
    %v77 = vsel %vm76, %v75, 0.0
    %vm78 = vcmask 941056
    %v79 = vsel %vm78, %v77, %v48
    %80 = vrot.lane.b32.xlu0 %v23, 54
    %v81 = vpop.permute.xlu0 %80
    %83 = vrot.lane.b32.xlu0 %v23, 60
    %v84 = vpop.permute.xlu0 %83
    %86 = vrot.lane.b32.xlu0 %v23, 66
    %v87 = vpop.permute.xlu0 %86
    %89 = vrot.lane.b32.xlu0 %v23, 72
    %v90 = vpop.permute.xlu0 %89
    %93 = vrot.lane.b32.xlu0 %v23, 78
    %v94 = vpop.permute.xlu0 %93
    %95 = vrot.lane.b32.xlu0 %v24, 78
    %v96 = vpop.permute.xlu0 %95
    %vm97 = vcmask 637952
    %v98 = vsel %vm97, %v94, %v96
    %100 = vrot.lane.b32.xlu0 %v24, 84
    %v101 = vpop.permute.xlu0 %100
    %103 = vrot.lane.b32.xlu0 %v24, 90
    %v104 = vpop.permute.xlu0 %103
    %106 = vrot.lane.b32.xlu0 %v24, 96
    %v107 = vpop.permute.xlu0 %106
    %vm109 = vcmask 48128
    %v110 = vsel %vm109, 0.0, %v81
    %vm111 = vcmask 130048
    %v112 = vsel %vm111, %v110, 0.0
    %vm113 = vcmask 179200
    %v114 = vsel %vm113, %v112, %v84
    %vm115 = vcmask 261120
    %v116 = vsel %vm115, %v114, 0.0
    %vm117 = vcmask 310272
    %v118 = vsel %vm117, %v116, %v87
    %vm119 = vcmask 392192
    %v120 = vsel %vm119, %v118, 0.0
    %vm121 = vcmask 441344
    %v122 = vsel %vm121, %v120, %v90
    %vm123 = vcmask 523264
    %v124 = vsel %vm123, %v122, 0.0
    %vm125 = vcmask 572416
    %v126 = vsel %vm125, %v124, %v98
    %vm127 = vcmask 654336
    %v128 = vsel %vm127, %v126, 0.0
    %vm129 = vcmask 703488
    %v130 = vsel %vm129, %v128, %v101
    %vm131 = vcmask 785408
    %v132 = vsel %vm131, %v130, 0.0
    %vm133 = vcmask 834560
    %v134 = vsel %vm133, %v132, %v104
    %vm135 = vcmask 916480
    %v136 = vsel %vm135, %v134, 0.0
    %vm137 = vcmask 965632
    %v138 = vsel %vm137, %v136, %v107
    %140 = vrot.lane.b32.xlu0 %v138, 125
    %v141 = vpop.permute.xlu0 %140
    %vm143 = vcmask 1022976
    %v144 = vsel %vm143, %v79, %v141
    %v145 = vsel %vm143, %v141, 0.0
    %146 = vst [vmem:[#allocation5] sm:$0xff] %v144
    %147 = vst [vmem:[#allocation5 + $0x8] sm:$0xff] %v145
    // Predicated region
    $region10: #{tpu_custom_call.1} parent=1 // pred_check
      _
    $region11: #{tpu_custom_call.1} parent=1 // pred_check_branch
      %149 = sbr.rel (0) target = $region13
    $region12: #{tpu_custom_call.1} parent=1 // pred_region
      %151 = vsyncadd [#allocation4], 0
      %s153 = sshll.u32 [#allocation5], 4
      %s154 = int_to_ptr.vmem [resolvable:$true] %s153
      %s155 = sshll.u32 %s1, 4
      %s156 = int_to_ptr.hbm [resolvable:$true] %s155
      %158 = dma.vmem_to_hbm [thread:$0]  %s154, 256, %s156, [#allocation4]
    $region13: #{tpu_custom_call.1} parent=1 // pred_fallthru
      _
    // Predicated region
    $region14: #{tpu_custom_call.1} parent=1 // pred_check
      _
    $region15: #{tpu_custom_call.1} parent=1 // pred_check_branch
      %160 = sbr.rel (0) target = $region17
    $region16: #{tpu_custom_call.1} parent=1 // pred_region
      %162 = dma.done [#allocation4], 256
    $region17: #{tpu_custom_call.1} parent=1 // pred_fallthru
      _
    %163 = vsyncpa [#allocation3], 1
    %164 = vsyncpa [#allocation4], 1

</llo_original>
